<compile_context>
chip_gen: v7x
topology: tpu7x:2x2x1
jax: 0.10.0
libtpu: 0.0.40
codegen_flags: <defaults>
</compile_context>

<pallas_src>
import functools

import jax
import jax.numpy as jnp
from jax import lax
from jax.experimental import pallas as pl
from jax.experimental.pallas import tpu as pltpu


def _round_up(x, m):
    return (x + m - 1) // m * m


def _ce_label_smooth_kernel(pids_ref, logits_ref, loss_ref,
                            m_ref, l_ref, s_ref, p_ref,
                            *, num_classes, epsilon, block_c,
                            last_block_partial):
    """One (batch-block, class-block) grid step of label-smoothed CE.

    pids_ref   : (TB, 1)  int32   labels for this batch block
    logits_ref : (TB, TC) float   logits tile (native dtype; math in f32)
    loss_ref   : (TB, 1)  f32     per-row loss (written on last class block)
    m/l/s/p    : (TB, 1)  f32 scratch: running max, running sum-exp,
                 running sum of logits, logit picked at the label column.
    """
    ci = pl.program_id(1)
    n_ci = pl.num_programs(1)

    @pl.when(ci == 0)
    def _init():
        m_ref[...] = jnp.full_like(m_ref, -jnp.inf)
        l_ref[...] = jnp.zeros_like(l_ref)
        s_ref[...] = jnp.zeros_like(s_ref)
        p_ref[...] = jnp.zeros_like(p_ref)

    logits = logits_ref[...].astype(jnp.float32)              # (TB, TC)
    # Local block coordinates: shift the (TB,1) label instead of adding
    # ci*block_c to a full (TB,TC) iota.
    col_local = lax.broadcasted_iota(jnp.int32, logits.shape, 1)
    pid_local = pids_ref[...] - ci * block_c                   # (TB, 1)

    def _accumulate(lse_in, sum_in):
        # ---- online log-sum-exp over the class axis ----
        m_old = m_ref[...]
        m_new = jnp.maximum(m_old, jnp.max(lse_in, axis=1, keepdims=True))
        alpha = jnp.exp(m_old - m_new)                         # 0 when m_old=-inf
        l_ref[...] = alpha * l_ref[...] + jnp.sum(jnp.exp(lse_in - m_new),
                                                  axis=1, keepdims=True)
        m_ref[...] = m_new
        # ---- running sum of logits and label-column pick (no one-hot) ----
        s_ref[...] += jnp.sum(sum_in, axis=1, keepdims=True)
        # pid_local is always < the number of valid columns in this block when
        # it matches, so padded/garbage columns can never be selected.
        p_ref[...] += jnp.sum(jnp.where(col_local == pid_local, logits, 0.0),
                              axis=1, keepdims=True)

    if last_block_partial:
        rem = num_classes % block_c            # static, > 0

        @pl.when(ci == n_ci - 1)
        def _partial_block():                  # only block that needs masking
            valid = col_local < rem
            _accumulate(jnp.where(valid, logits, jnp.float32(-jnp.inf)),
                        jnp.where(valid, logits, 0.0))

        @pl.when(ci != n_ci - 1)
        def _full_block():                     # unmasked fast path
            _accumulate(logits, logits)
    else:
        _accumulate(logits, logits)

    @pl.when(ci == n_ci - 1)
    def _finalize():
        # loss_i = (1-eps)*(lse - logits[i,y_i]) + (eps/C)*sum_j(lse - logits[i,j])
        #        = lse - (1-eps)*picked - (eps/C)*sum_logits
        lse = m_ref[...] + jnp.log(l_ref[...])
        loss_ref[...] = (lse
                         - (1.0 - epsilon) * p_ref[...]
                         - (epsilon / num_classes) * s_ref[...])


@functools.partial(jax.jit, static_argnames=("epsilon", "block_b", "block_c"))
def _ce_label_smooth_pallas(logits, targets, epsilon=0.1,
                            block_b=None, block_c=None):
    B, C = logits.shape
    itemsize = jnp.dtype(logits.dtype).itemsize
    sub = max(8, 32 // itemsize)          # packed-sublane row multiple (8/16/32)

    if block_b is None:
        if B <= 2 * sub:
            block_b = B                   # single full-dim batch block
        elif B <= 512:
            # >= 2 batch blocks so the "parallel" axis can span both v7x cores
            block_b = _round_up(pl.cdiv(B, 2), sub)
        else:
            block_b = 256
    if block_c is None:
        if C <= 8192:
            block_c = C                   # whole class axis: one block, no mask
        else:
            # ~4 MiB logits tile, lane multiple
            bc = ((4 << 20) // (block_b * itemsize)) // 128 * 128
            block_c = max(512, min(8192, bc))

    grid_b = pl.cdiv(B, block_b)
    grid_c = pl.cdiv(C, block_c)
    last_block_partial = (C % block_c) != 0

    pids = targets.astype(jnp.int32).reshape(B, 1)   # tiny; no logits padding

    kernel = functools.partial(
        _ce_label_smooth_kernel,
        num_classes=C, epsilon=float(epsilon), block_c=block_c,
        last_block_partial=last_block_partial)

    # VMEM budget: double-buffered logits tiles + lane-padded (TB,1) columns
    # (labels/out double-buffered + 4 scratch).  Cap at 48 MiB so the same
    # code path keeps headroom on v7x's 64 MiB physical VMEM.
    col_bytes = block_b * 128 * 4
    working = 2 * block_b * block_c * itemsize + 8 * col_bytes
    vmem_limit = int(min(48 << 20, max(8 << 20, 2 * working)))

    per_row = pl.pallas_call(
        kernel,
        out_shape=jax.ShapeDtypeStruct((B, 1), jnp.float32),
        grid_spec=pltpu.PrefetchScalarGridSpec(
            num_scalar_prefetch=0,
            grid=(grid_b, grid_c),                      # class (reduction) last
            in_specs=[
                pl.BlockSpec((block_b, 1), lambda bi, ci: (bi, 0)),        # labels
                pl.BlockSpec((block_b, block_c), lambda bi, ci: (bi, ci)), # logits
            ],
            out_specs=pl.BlockSpec((block_b, 1), lambda bi, ci: (bi, 0)),
            scratch_shapes=[pltpu.VMEM((block_b, 1), jnp.float32)] * 4,
        ),
        compiler_params=pltpu.CompilerParams(
            dimension_semantics=("parallel", "arbitrary"),
            vmem_limit_bytes=vmem_limit),
    )(pids, logits)

    # (-targets * log_probs).mean(0).sum()  ==  (1/B) * sum_i loss_i
    return jnp.sum(per_row) / B


class CrossEntropyLabelSmooth:
    """JAX/Pallas mirror of the PyTorch CrossEntropyLabelSmooth module."""

    def __init__(self, num_classes, epsilon=0.1, use_gpu=True):
        del use_gpu
        self.num_classes = num_classes
        self.epsilon = epsilon

    def __call__(self, inputs, targets):
        assert inputs.shape[1] == self.num_classes
        return _ce_label_smooth_pallas(inputs, targets, epsilon=self.epsilon)


# ---------------- pure-JAX reference (sanity check) --------------------------
def _reference(inputs, targets, num_classes, epsilon=0.1):
    log_probs = jax.nn.log_softmax(inputs.astype(jnp.float32), axis=1)
    t = jax.nn.one_hot(targets, num_classes, dtype=jnp.float32)
    t = (1.0 - epsilon) * t + epsilon / num_classes
    return jnp.sum(jnp.mean(-t * log_probs, axis=0))


if __name__ == "__main__":
    key = jax.random.PRNGKey(0)

    # (B, C, dtype): small shapes exercising single-block, ragged batch block,
    # partial class block, and the bf16 (native-dtype HBM/VMEM) path.
    cases = [
        (6, 300, jnp.float32),      # full-dim single block, no masking
        (24, 9000, jnp.float32),    # 2 batch blocks (1 ragged) + partial class block
        (40, 9000, jnp.bfloat16),   # bf16 path, ragged batch + partial class block
    ]

    for B, C, dt in cases:
        key, k1, k2 = jax.random.split(key, 3)
        logits = jax.random.normal(k1, (B, C), dtype=jnp.float32).astype(dt)
        targets = jax.random.randint(k2, (B,), 0, C, dtype=jnp.int32)

        criterion = CrossEntropyLabelSmooth(num_classes=C, epsilon=0.1)
        loss = jax.block_until_ready(criterion(logits, targets))
        ref = jax.block_until_ready(_reference(logits, targets, C, 0.1))
        assert jnp.allclose(loss, ref, rtol=1e-4, atol=1e-4), (B, C, dt, loss, ref)

    print("KERNEL_OK")
</pallas_src>

<mosaic_0001>
module attributes {stable_mosaic.version = 11 : i64} {
  func.func @_ce_label_smooth_kernel(%arg0: i32, %arg1: i32, %arg2: memref<6x1xi32, #tpu.memory_space<vmem>>, %arg3: memref<6x300xf32, #tpu.memory_space<vmem>>, %arg4: memref<6x1xf32, #tpu.memory_space<vmem>>, %arg5: memref<6x1xf32, #tpu.memory_space<vmem>>, %arg6: memref<6x1xf32, #tpu.memory_space<vmem>>, %arg7: memref<6x1xf32, #tpu.memory_space<vmem>>, %arg8: memref<6x1xf32, #tpu.memory_space<vmem>>) attributes {dimension_semantics = [#tpu.dimension_semantics<parallel>, #tpu.dimension_semantics<arbitrary>], iteration_bounds = array<i64: 1, 1>, scalar_prefetch = 0 : i64, scratch_operands = 4 : i64, tpu.core_type = #tpu.core_type<tc>, window_params = [{transform_indices = @transform_0, window_bounds = array<i64: 6, 1>}, {transform_indices = @transform_1, window_bounds = array<i64: 6, 300>}, {transform_indices = @transform_2, window_bounds = array<i64: 6, 1>}]} {
    %c0_i32 = arith.constant 0 : i32
    %0 = arith.cmpi eq, %arg1, %c0_i32 : i32
    %1 = arith.extui %0 : i1 to i32
    %c0_i32_0 = arith.constant 0 : i32
    %2 = arith.cmpi ne, %1, %c0_i32_0 : i32
    scf.if %2 {
      %cst_26 = arith.constant 0xFF800000 : f32
      %42 = vector.broadcast %cst_26 : f32 to vector<6x1xf32>
      %c0_27 = arith.constant 0 : index
      %c0_28 = arith.constant 0 : index
      %43 = vector.load %arg5[%c0_27, %c0_28] : memref<6x1xf32, #tpu.memory_space<vmem>>, vector<6x1xf32>
      tpu.vector_store %arg5[%c0_27, %c0_28], %42 {strides = array<i32>} : memref<6x1xf32, #tpu.memory_space<vmem>>, vector<6x1xf32>,
      %cst_29 = arith.constant 0.000000e+00 : f32
      %44 = vector.broadcast %cst_29 : f32 to vector<6x1xf32>
      %c0_30 = arith.constant 0 : index
      %c0_31 = arith.constant 0 : index
      %45 = vector.load %arg6[%c0_30, %c0_31] : memref<6x1xf32, #tpu.memory_space<vmem>>, vector<6x1xf32>
      tpu.vector_store %arg6[%c0_30, %c0_31], %44 {strides = array<i32>} : memref<6x1xf32, #tpu.memory_space<vmem>>, vector<6x1xf32>,
      %cst_32 = arith.constant 0.000000e+00 : f32
      %46 = vector.broadcast %cst_32 : f32 to vector<6x1xf32>
      %c0_33 = arith.constant 0 : index
      %c0_34 = arith.constant 0 : index
      %47 = vector.load %arg7[%c0_33, %c0_34] : memref<6x1xf32, #tpu.memory_space<vmem>>, vector<6x1xf32>
      tpu.vector_store %arg7[%c0_33, %c0_34], %46 {strides = array<i32>} : memref<6x1xf32, #tpu.memory_space<vmem>>, vector<6x1xf32>,
      %cst_35 = arith.constant 0.000000e+00 : f32
      %48 = vector.broadcast %cst_35 : f32 to vector<6x1xf32>
      %c0_36 = arith.constant 0 : index
      %c0_37 = arith.constant 0 : index
      %49 = vector.load %arg8[%c0_36, %c0_37] : memref<6x1xf32, #tpu.memory_space<vmem>>, vector<6x1xf32>
      tpu.vector_store %arg8[%c0_36, %c0_37], %48 {strides = array<i32>} : memref<6x1xf32, #tpu.memory_space<vmem>>, vector<6x1xf32>,
    } else {
    }
    %c0 = arith.constant 0 : index
    %c0_1 = arith.constant 0 : index
    %3 = vector.load %arg3[%c0, %c0_1] : memref<6x300xf32, #tpu.memory_space<vmem>>, vector<6x300xf32>
    %4 = tpu.iota {dimensions = array<i32: 1>} : vector<6x300xi32>
    %c0_2 = arith.constant 0 : index
    %c0_3 = arith.constant 0 : index
    %5 = vector.load %arg2[%c0_2, %c0_3] : memref<6x1xi32, #tpu.memory_space<vmem>>, vector<6x1xi32>
    %c300_i32 = arith.constant 300 : i32
    %6 = arith.muli %arg1, %c300_i32 : i32
    %7 = vector.broadcast %6 : i32 to vector<6x1xi32>
    %8 = arith.subi %5, %7 : vector<6x1xi32>
    %c0_4 = arith.constant 0 : index
    %c0_5 = arith.constant 0 : index
    %9 = vector.load %arg5[%c0_4, %c0_5] : memref<6x1xf32, #tpu.memory_space<vmem>>, vector<6x1xf32>
    %cst = arith.constant dense<0xFF800000> : vector<6xf32>
    %10 = vector.multi_reduction <maximumf>, %3, %cst [1] : vector<6x300xf32> to vector<6xf32>
    %11 = vector.shape_cast %10 : vector<6xf32> to vector<6x1xf32>
    %12 = arith.maximumf %9, %11 : vector<6x1xf32>
    %13 = arith.subf %9, %12 : vector<6x1xf32>
    %14 = math.exp %13 : vector<6x1xf32>
    %c0_6 = arith.constant 0 : index
    %c0_7 = arith.constant 0 : index
    %15 = vector.load %arg6[%c0_6, %c0_7] : memref<6x1xf32, #tpu.memory_space<vmem>>, vector<6x1xf32>
    %16 = arith.mulf %14, %15 : vector<6x1xf32>
    %17 = vector.broadcast %12 : vector<6x1xf32> to vector<6x300xf32>
    %18 = arith.subf %3, %17 : vector<6x300xf32>
    %19 = math.exp %18 : vector<6x300xf32>
    %cst_8 = arith.constant dense<0.000000e+00> : vector<6xf32>
    %20 = vector.multi_reduction <add>, %19, %cst_8 [1] : vector<6x300xf32> to vector<6xf32>
    %21 = vector.shape_cast %20 : vector<6xf32> to vector<6x1xf32>
    %22 = arith.addf %16, %21 : vector<6x1xf32>
    %c0_9 = arith.constant 0 : index
    %c0_10 = arith.constant 0 : index
    %23 = vector.load %arg6[%c0_9, %c0_10] : memref<6x1xf32, #tpu.memory_space<vmem>>, vector<6x1xf32>
    tpu.vector_store %arg6[%c0_9, %c0_10], %22 {strides = array<i32>} : memref<6x1xf32, #tpu.memory_space<vmem>>, vector<6x1xf32>,
    %c0_11 = arith.constant 0 : index
    %c0_12 = arith.constant 0 : index
    %24 = vector.load %arg5[%c0_11, %c0_12] : memref<6x1xf32, #tpu.memory_space<vmem>>, vector<6x1xf32>
    tpu.vector_store %arg5[%c0_11, %c0_12], %12 {strides = array<i32>} : memref<6x1xf32, #tpu.memory_space<vmem>>, vector<6x1xf32>,
    %c0_13 = arith.constant 0 : index
    %c0_14 = arith.constant 0 : index
    %25 = vector.load %arg7[%c0_13, %c0_14] : memref<6x1xf32, #tpu.memory_space<vmem>>, vector<6x1xf32>
    %cst_15 = arith.constant dense<0.000000e+00> : vector<6xf32>
    %26 = vector.multi_reduction <add>, %3, %cst_15 [1] : vector<6x300xf32> to vector<6xf32>
    %27 = vector.shape_cast %26 : vector<6xf32> to vector<6x1xf32>
    %28 = arith.addf %25, %27 : vector<6x1xf32>
    %c0_16 = arith.constant 0 : index
    %c0_17 = arith.constant 0 : index
    %29 = vector.load %arg7[%c0_16, %c0_17] : memref<6x1xf32, #tpu.memory_space<vmem>>, vector<6x1xf32>
    tpu.vector_store %arg7[%c0_16, %c0_17], %28 {strides = array<i32>} : memref<6x1xf32, #tpu.memory_space<vmem>>, vector<6x1xf32>,
    %c0_18 = arith.constant 0 : index
    %c0_19 = arith.constant 0 : index
    %30 = vector.load %arg8[%c0_18, %c0_19] : memref<6x1xf32, #tpu.memory_space<vmem>>, vector<6x1xf32>
    %31 = vector.broadcast %8 : vector<6x1xi32> to vector<6x300xi32>
    %32 = arith.cmpi eq, %4, %31 : vector<6x300xi32>
    %cst_20 = arith.constant 0.000000e+00 : f32
    %33 = vector.broadcast %cst_20 : f32 to vector<6x300xf32>
    %34 = arith.select %32, %3, %33 : vector<6x300xi1>, vector<6x300xf32>
    %cst_21 = arith.constant dense<0.000000e+00> : vector<6xf32>
    %35 = vector.multi_reduction <add>, %34, %cst_21 [1] : vector<6x300xf32> to vector<6xf32>
    %36 = vector.shape_cast %35 : vector<6xf32> to vector<6x1xf32>
    %37 = arith.addf %30, %36 : vector<6x1xf32>
    %c0_22 = arith.constant 0 : index
    %c0_23 = arith.constant 0 : index
    %38 = vector.load %arg8[%c0_22, %c0_23] : memref<6x1xf32, #tpu.memory_space<vmem>>, vector<6x1xf32>
    tpu.vector_store %arg8[%c0_22, %c0_23], %37 {strides = array<i32>} : memref<6x1xf32, #tpu.memory_space<vmem>>, vector<6x1xf32>,
    %c0_i32_24 = arith.constant 0 : i32
    %39 = arith.cmpi eq, %arg1, %c0_i32_24 : i32
    %40 = arith.extui %39 : i1 to i32
    %c0_i32_25 = arith.constant 0 : i32
    %41 = arith.cmpi ne, %40, %c0_i32_25 : i32
    scf.if %41 {
      %c0_26 = arith.constant 0 : index
      %c0_27 = arith.constant 0 : index
      %42 = vector.load %arg5[%c0_26, %c0_27] : memref<6x1xf32, #tpu.memory_space<vmem>>, vector<6x1xf32>
      %c0_28 = arith.constant 0 : index
      %c0_29 = arith.constant 0 : index
      %43 = vector.load %arg6[%c0_28, %c0_29] : memref<6x1xf32, #tpu.memory_space<vmem>>, vector<6x1xf32>
      %44 = math.log %43 : vector<6x1xf32>
      %45 = arith.addf %42, %44 : vector<6x1xf32>
      %c0_30 = arith.constant 0 : index
      %c0_31 = arith.constant 0 : index
      %46 = vector.load %arg8[%c0_30, %c0_31] : memref<6x1xf32, #tpu.memory_space<vmem>>, vector<6x1xf32>
      %cst_32 = arith.constant 0.899999976 : f32
      %47 = vector.broadcast %cst_32 : f32 to vector<6x1xf32>
      %48 = arith.mulf %47, %46 : vector<6x1xf32>
      %49 = arith.subf %45, %48 : vector<6x1xf32>
      %c0_33 = arith.constant 0 : index
      %c0_34 = arith.constant 0 : index
      %50 = vector.load %arg7[%c0_33, %c0_34] : memref<6x1xf32, #tpu.memory_space<vmem>>, vector<6x1xf32>
      %cst_35 = arith.constant 3.3333333E-4 : f32
      %51 = vector.broadcast %cst_35 : f32 to vector<6x1xf32>
      %52 = arith.mulf %51, %50 : vector<6x1xf32>
      %53 = arith.subf %49, %52 : vector<6x1xf32>
      %c0_36 = arith.constant 0 : index
      %c0_37 = arith.constant 0 : index
      %54 = vector.load %arg4[%c0_36, %c0_37] : memref<6x1xf32, #tpu.memory_space<vmem>>, vector<6x1xf32>
      tpu.vector_store %arg4[%c0_36, %c0_37], %53 {strides = array<i32>} : memref<6x1xf32, #tpu.memory_space<vmem>>, vector<6x1xf32>,
    } else {
    }
    return
  }
  func.func @transform_0(%arg0: i32, %arg1: i32) -> (i32, i32) {
    %c0_i32 = arith.constant 0 : i32
    %c0_i32_0 = arith.constant 0 : i32
    return %arg0, %c0_i32 : i32, i32
  }
  func.func @transform_1(%arg0: i32, %arg1: i32) -> (i32, i32) {
    %c0_i32 = arith.constant 0 : i32
    return %arg0, %arg1 : i32, i32
  }
  func.func @transform_2(%arg0: i32, %arg1: i32) -> (i32, i32) {
    %c0_i32 = arith.constant 0 : i32
    %c0_i32_0 = arith.constant 0 : i32
    return %arg0, %c0_i32 : i32, i32
  }
}

</mosaic_0001>

<llo_original>
// kernel: _ce_label_smooth_pallas.1
$region0: #{_ce_label_smooth_pallas.1}
  #allocation0 [shape = 'u32[]', space=smem, size = 0x4, offset = 0x4, fixed_abs, tag = 'smem constant byte address 0x4 - core index']
  #allocation1 [shape = 'u32[144,128]{1,0:T(1,128)}', space=vmem, size = 0x12000, scoped, tag = 'internal scratch']
  #allocation2 [shape = 'f32[6,1]{1,0:T(8,128)}', space=vmem, size = 0x1000, scoped, tag = 'scratch operand']
  #allocation3 [shape = 'f32[6,1]{1,0:T(8,128)}', space=vmem, size = 0x1000, scoped, tag = 'scratch operand']
  #allocation4 [shape = 'f32[6,1]{1,0:T(8,128)}', space=vmem, size = 0x1000, scoped, tag = 'scratch operand']
  #allocation5 [shape = 'f32[6,1]{1,0:T(8,128)}', space=vmem, size = 0x1000, scoped, tag = 'scratch operand']
  %s0 = inlined_call_operand.vmem [shape: s32[6,1], index: 0, kind: input, shape index: {}]
  %s1 = inlined_call_operand.hbm [shape: f32[6,300], index: 1, kind: input, shape index: {}]
  %s2 = inlined_call_operand.vmem [shape: f32[6,1], index: 2, kind: output, shape index: {}]
  %s3 = sld [smem:[#allocation0]]
  $region30: #{_ce_label_smooth_pallas.1} parent=0
    _
  %s5 = ssub.s32 1, %s3
  %s6 = scalar_select 0, %s5, %s3
  $region1: #{_ce_label_smooth_pallas.1} parent=0
    #allocation6 [shape = 'u8[12288]{0}', space=vmem, size = 0x3000, scoped, tag = 'input window, operand 1, single buffered']
    #allocation7 [shape = 's32[1]{0}', space=sflag, size = 0x4, scoped, tag = 'scoped memory for _ce_label_smooth_pallas.1']
    %7 = vsyncpa [#allocation7], 0
    // Predicated region
    $region2: #{_ce_label_smooth_pallas.1} parent=1 // pred_check
      _
    $region3: #{_ce_label_smooth_pallas.1} parent=1 // pred_check_branch
      %9 = sbr.rel (0) target = $region5
    $region4: #{_ce_label_smooth_pallas.1} parent=1 // pred_region
      _
    $region5: #{_ce_label_smooth_pallas.1} parent=1 // pred_fallthru
      _
    // Predicated region
    $region6: #{_ce_label_smooth_pallas.1} parent=1 // pred_check
      _
    $region7: #{_ce_label_smooth_pallas.1} parent=1 // pred_check_branch
      %11 = sbr.rel (0) target = $region9
    $region8: #{_ce_label_smooth_pallas.1} parent=1 // pred_region
      %s13 = ssub.s32 384, 384
      %14 = vsyncadd [#allocation7], %s13
      %s16 = sshll.u32 [#allocation6], 4
      %s17 = int_to_ptr.vmem [resolvable:$true] %s16
      %19 = dma.hbm_to_vmem [thread:$0]  %s1, 384, %s17, [#allocation7]
    $region9: #{_ce_label_smooth_pallas.1} parent=1 // pred_fallthru
      _
    // Predicated region
    $region10: #{_ce_label_smooth_pallas.1} parent=1 // pred_check
      _
    $region11: #{_ce_label_smooth_pallas.1} parent=1 // pred_check_branch
      %21 = sbr.rel (0) target = $region13
    $region12: #{_ce_label_smooth_pallas.1} parent=1 // pred_region
      %22 = dma.done [#allocation7], 384
    $region13: #{_ce_label_smooth_pallas.1} parent=1 // pred_fallthru
      _
    %p23 = scmp.eq.s32.totalorder 0, 0
    // Predicated region
    $region14: #{_ce_label_smooth_pallas.1} parent=1 // pred_check
      %p24 = pneg %p23
    $region15: #{_ce_label_smooth_pallas.1} parent=1 // pred_check_branch
      %26 = sbr.rel (%p24) target = $region17
    $region16: #{_ce_label_smooth_pallas.1} parent=1 // pred_region
      %vm27 = vcmask 5120
      %28 = vst.msk [vmem:[#allocation2] sm:$0x3f] %vm27, -inf
      %29 = vst.msk [vmem:[#allocation3] sm:$0x3f] %vm27, 0.0
      %30 = vst.msk [vmem:[#allocation4] sm:$0x3f] %vm27, 0.0
      %31 = vst.msk [vmem:[#allocation5] sm:$0x3f] %vm27, 0.0
    $region17: #{_ce_label_smooth_pallas.1} parent=1 // pred_fallthru
      _
    %v32 = vld [vmem:[#allocation6] sm:$0x3f]
    %v33 = vld [vmem:[#allocation6 + $0x8] sm:$0x3f]
    %v34 = vld [vmem:[#allocation6 + $0x10] sm:$0x3f]
    %v35 = vlaneseq
    %v36 = vand.u32 %v35, 127
    %v37 = vadd.s32 %v36, 128
    %v38 = vadd.s32 %v36, 256
    %v39 = vld [vmem:[%s0] sm:$0x3f]
    %s40 = smul.u32 0, 300
    %v41 = vstv %s40
    %v42 = vsub.s32 %v39, %v41
    %v43 = vld [vmem:[#allocation2] sm:$0x3f]
    %vm44 = vcmask 1045504
    %v45 = vsel %vm44, %v32, -inf
    %v46 = vsel %vm44, %v33, -inf
    %vm47 = vcmask 357376
    %v48 = vsel %vm47, %v34, -inf
    %v49 = vmax.f32 %v45, %v46
    %v50 = vmax.f32 %v49, %v48
    %51 = vmax.xlane.f32.xlu0 %v50
    %v52 = vpop.xlane.xlu0 %51
    %v53 = vmax.f32 %v43, %v52
    %v54 = vsub.f32 %v43, %v53
    %v55 = vmul.f32 %v54, 1.442695
    %v56 = vpow.pop %v55
    %v57 = vld [vmem:[#allocation3] sm:$0x3f]
    %v58 = vmul.f32 %v56, %v57
    %60 = vset.pattern.permute.xlu0 0
    %61 = vperm.xlu0 %60, %v53
    %v62 = vpop.permute.xlu0 %61
    %v64 = vsub.f32 %v32, %v62
    %v65 = vsub.f32 %v33, %v62
    %v66 = vsub.f32 %v34, %v62
    %v67 = vmul.f32 %v64, 1.442695
    %v68 = vpow.pop %v67
    %v69 = vmul.f32 %v65, 1.442695
    %v70 = vpow.pop %v69
    %v71 = vmul.f32 %v66, 1.442695
    %v72 = vpow.pop %v71
    %v73 = vsel %vm44, %v68, 0.0
    %v74 = vsel %vm44, %v70, 0.0
    %v75 = vadd.f32 %v73, %v74
    %v76 = vsel %vm47, %v72, 0.0
    %v77 = vadd.f32 %v75, %v76
    %78 = vadd.xlane.f32.xlu0 %v77
    %v79 = vpop.xlane.xlu0 %78
    %v80 = vadd.f32 %v58, %v79
    %vm81 = vcmask 5120
    %82 = vst.msk [vmem:[#allocation3] sm:$0x3f] %vm81, %v80
    %83 = vst.msk [vmem:[#allocation2] sm:$0x3f] %vm81, %v53
    %v84 = vld [vmem:[#allocation4] sm:$0x3f]
    %v85 = vsel %vm44, %v32, 0.0
    %v86 = vsel %vm44, %v33, 0.0
    %v87 = vadd.f32 %v85, %v86
    %v88 = vsel %vm47, %v34, 0.0
    %v89 = vadd.f32 %v87, %v88
    %90 = vadd.xlane.f32.xlu0 %v89
    %v91 = vpop.xlane.xlu0 %90
    %v92 = vadd.f32 %v84, %v91
    %93 = vst.msk [vmem:[#allocation4] sm:$0x3f] %vm81, %v92
    %v94 = vld [vmem:[#allocation5] sm:$0x3f]
    %95 = vset.pattern.permute.xlu0 0
    %96 = vperm.xlu0 %95, %v42
    %v97 = vpop.permute.xlu0 %96
    %vm98 = vcmp.eq.s32.totalorder %v36, %v97
    %vm99 = vcmp.eq.s32.totalorder %v37, %v97
    %vm100 = vcmp.eq.s32.totalorder %v38, %v97
    %v101 = vsel %vm98, %v32, 0.0
    %v102 = vsel %vm99, %v33, 0.0
    %v103 = vsel %vm100, %v34, 0.0
    %v104 = vsel %vm44, %v101, 0.0
    %v105 = vsel %vm44, %v102, 0.0
    %v106 = vadd.f32 %v104, %v105
    %v107 = vsel %vm47, %v103, 0.0
    %v108 = vadd.f32 %v106, %v107
    %109 = vadd.xlane.f32.xlu0 %v108
    %v110 = vpop.xlane.xlu0 %109
    %v111 = vadd.f32 %v94, %v110
    %112 = vst.msk [vmem:[#allocation5] sm:$0x3f] %vm81, %v111
    // Predicated region
    $region18: #{_ce_label_smooth_pallas.1} parent=1 // pred_check
      %p113 = pneg %p23
    $region19: #{_ce_label_smooth_pallas.1} parent=1 // pred_check_branch
      %115 = sbr.rel (%p113) target = $region21
    $region20: #{_ce_label_smooth_pallas.1} parent=1 // pred_region
      %v116 = vld [vmem:[#allocation2] sm:$0x3f]
      %v117 = vld [vmem:[#allocation3] sm:$0x3f]
      %v118 = vlog2.pop %v117
      %v119 = vmul.f32 %v118, 0.6931472
      %v120 = vadd.f32 %v116, %v119
      %v121 = vld [vmem:[#allocation5] sm:$0x3f]
      %v122 = vmul.f32 %v121, 0.9
      %v123 = vsub.f32 %v120, %v122
      %v124 = vld [vmem:[#allocation4] sm:$0x3f]
      %v125 = vmul.f32 %v124, 0.00033333333
      %v126 = vsub.f32 %v123, %v125
      %127 = vst.msk [vmem:[%s2] sm:$0x3f] %vm81, %v126
    $region21: #{_ce_label_smooth_pallas.1} parent=1 // pred_fallthru
      _
    // Predicated region
    $region22: #{_ce_label_smooth_pallas.1} parent=1 // pred_check
      _
    $region23: #{_ce_label_smooth_pallas.1} parent=1 // pred_check_branch
      %129 = sbr.rel (0) target = $region25
    $region24: #{_ce_label_smooth_pallas.1} parent=1 // pred_region
      _
    $region25: #{_ce_label_smooth_pallas.1} parent=1 // pred_fallthru
      _
    // Predicated region
    $region26: #{_ce_label_smooth_pallas.1} parent=1 // pred_check
      _
    $region27: #{_ce_label_smooth_pallas.1} parent=1 // pred_check_branch
      %131 = sbr.rel (0) target = $region29
    $region28: #{_ce_label_smooth_pallas.1} parent=1 // pred_region
      _
    $region29: #{_ce_label_smooth_pallas.1} parent=1 // pred_fallthru
      _
    %132 = vsyncpa [#allocation7], 1

</llo_original>
